<compile_context>
chip_gen: v6e
topology: v6e:2x2x1
jax: 0.10.0
libtpu: 0.0.40
codegen_flags: <defaults>
</compile_context>

<pallas_src>
import functools

import jax
import jax.numpy as jnp
from jax.experimental import pallas as pl
from jax.experimental.pallas import tpu as pltpu


_VMEM_LIMIT = 40 * 1024 * 1024  # explicit scoped-VMEM limit (safe on v5e/v6e/v7x)


def _round_up(x, m):
    return (x + m - 1) // m * m


# ----------------------------------------------------------------------------
# Tile-size selection
# ----------------------------------------------------------------------------
def _choose_m_tiling(M):
    """Rows: small M collapses to one block (memory-bound calls); large M uses 512-row tiles
    (plenty of parallel blocks for v7x megacore)."""
    Mp = _round_up(M, 16)
    if Mp <= 512:
        return Mp, Mp
    for tm in (512, 256):
        if Mp % tm == 0:
            return tm, Mp
    return 512, _round_up(M, 512)


def _choose_k_tiling(K):
    """Single K step whenever Kp <= 2048 (fits VMEM, deletes init/finalize branches); otherwise
    the fewest equal 128-aligned steps <= 2048 (no more tk=128 skinny fallback for K=576 etc.)."""
    Kp = _round_up(K, 128)
    if Kp <= 2048:
        return Kp, Kp
    steps = pl.cdiv(Kp, 2048)
    tk = _round_up(pl.cdiv(Kp, steps), 128)
    return tk, tk * steps


def _choose_n_tiling(N, prefer_split=False):
    """Single N block up to 512 lanes (avoids re-streaming A across j blocks on 1-TC chips);
    split when N is large, or when the M axis collapsed to one block so that v7x still gets
    >= 2 parallel grid blocks."""
    Np = _round_up(N, 128)
    if Np > 512 or (prefer_split and Np >= 256):
        for tn in (512, 256, 128):
            if Np % tn == 0 and Np // tn >= 2:
                return tn, Np
        return 512, _round_up(N, 512)
    return Np, Np


def _plan_row_blocks(Mtall, halo, C):
    """Flat-row tile (tM), halo block size (H2, power of two dividing tM) and row-block count
    for the shifted-tap kernels (fused stride-1 conv / max-pool)."""
    H2 = max(8, pl.next_power_of_2(max(halo, 1)))
    # ~256 KiB bf16 per input block; >=512 rows keeps the MXU M dimension well fed.
    tM = max(512, min(2048, pl.next_power_of_2(max(1, 131072 // (2 * C)))))
    tM = max(tM, H2)
    if Mtall < tM:
        tM = max(H2, _round_up(Mtall, H2))
    nb = pl.cdiv(Mtall, tM)
    return tM, H2, nb


# ----------------------------------------------------------------------------
# Pallas kernels
# ----------------------------------------------------------------------------
def _make_matmul_kernel(relu, has_residual, multi_k):
    """o = [relu]((a @ b) * scale + bias [+ residual]); K accumulated over grid axis 2 if multi_k."""

    def kernel(*refs):
        if has_residual:
            a_ref, b_ref, s_ref, t_ref, r_ref, o_ref = refs[:6]
        else:
            a_ref, b_ref, s_ref, t_ref, o_ref = refs[:5]
            r_ref = None
        acc_ref = refs[-1] if multi_k else None

        d = jnp.dot(a_ref[...], b_ref[...], preferred_element_type=jnp.float32)

        def epilogue(acc):
            y = acc * s_ref[...] + t_ref[...]
            if has_residual:
                y = y + r_ref[...].astype(jnp.float32)
            if relu:
                y = jnp.maximum(y, 0.0)
            o_ref[...] = y.astype(o_ref.dtype)

        if not multi_k:
            epilogue(d)
        else:
            k = pl.program_id(2)

            @pl.when(k == 0)
            def _():
                acc_ref[...] = d          # direct write: no zero-fill + reload of the accumulator

            @pl.when(k > 0)
            def _():
                acc_ref[...] += d

            @pl.when(k == pl.num_programs(2) - 1)
            def _():
                epilogue(acc_ref[...])

    return kernel


def _make_shift_conv_kernel(tM, H2, C, offsets, relu):
    """Fused stride-1 KxK conv: stage the current flat-row block + its halo into VMEM, then
    accumulate kh*kw (tM,C)x(C,tn) MXU dots at static row offsets.  Epilogue fuses the folded
    BN scale/bias and optional ReLU."""

    def kernel(x0_ref, x1_ref, w_ref, s_ref, t_ref, o_ref, xbuf_ref, acc_ref):
        xbuf_ref[0:tM, :] = x0_ref[...]
        xbuf_ref[tM:tM + H2, :] = x1_ref[...]
        for t, f in enumerate(offsets):
            d = jnp.dot(
                xbuf_ref[f:f + tM, :],
                w_ref[t * C:(t + 1) * C, :],
                preferred_element_type=jnp.float32,
            )
            if t == 0:
                acc_ref[...] = d
            else:
                acc_ref[...] += d
        y = acc_ref[...] * s_ref[...] + t_ref[...]
        if relu:
            y = jnp.maximum(y, 0.0)
        o_ref[...] = y.astype(o_ref.dtype)

    return kernel


def _make_shift_max_kernel(tM, H2, offsets):
    """Stride-1 3x3 max over flat rows (same block + halo staging as the fused conv)."""

    def kernel(x0_ref, x1_ref, o_ref, xbuf_ref):
        xbuf_ref[0:tM, :] = x0_ref[...]
        xbuf_ref[tM:tM + H2, :] = x1_ref[...]
        m = xbuf_ref[offsets[0]:offsets[0] + tM, :]
        for f in offsets[1:]:
            m = jnp.maximum(m, xbuf_ref[f:f + tM, :])
        o_ref[...] = m

    return kernel


def _l2norm_kernel(x_ref, o_ref):
    x = x_ref[...]
    ss = jnp.sum(x * x, axis=1, keepdims=True)
    # rsqrt goes to the EUP; eps^2 guard matches F.normalize(dim=1, eps=1e-12) for ||x|| >= eps
    o_ref[...] = x * jax.lax.rsqrt(jnp.maximum(ss, 1e-24))


# ----------------------------------------------------------------------------
# Pallas wrappers
# ----------------------------------------------------------------------------
@functools.partial(jax.jit, static_argnames=("relu", "out_dtype"))
def matmul_scale_bias(a, b, scale, bias, residual=None, *, relu, out_dtype=jnp.bfloat16):
    """a:(M,K) @ b:(K,N) with fused per-column scale/bias (+residual, +ReLU).

    A/B/residual are cast to bf16 for the MXU; accumulation and the epilogue stay in f32 (small
    deviation vs. PyTorch's f32 conv, acceptable for eval-mode inference).
    """
    M, K = a.shape
    _, N = b.shape

    tm, Mp = _choose_m_tiling(M)
    tk, Kp = _choose_k_tiling(K)
    tn, Np = _choose_n_tiling(N, prefer_split=(Mp // tm == 1))
    k_steps = Kp // tk
    multi_k = k_steps > 1

    a = a.astype(jnp.bfloat16)
    b = b.astype(jnp.bfloat16)
    if (Mp, Kp) != (M, K):
        a = jnp.zeros((Mp, Kp), jnp.bfloat16).at[:M, :K].set(a)
    if (Kp, Np) != (K, N):
        b = jnp.zeros((Kp, Np), jnp.bfloat16).at[:K, :N].set(b)

    scale = scale.astype(jnp.float32)
    bias = bias.astype(jnp.float32)
    if Np != N:
        scale = jnp.zeros((Np,), jnp.float32).at[:N].set(scale)
        bias = jnp.zeros((Np,), jnp.float32).at[:N].set(bias)
    s_p = scale.reshape(1, Np)
    t_p = bias.reshape(1, Np)

    in_specs = [
        pl.BlockSpec((tm, tk), lambda i, j, k: (i, k)),
        pl.BlockSpec((tk, tn), lambda i, j, k: (k, j)),
        pl.BlockSpec((1, tn), lambda i, j, k: (0, j)),   # resident across k (index_map k-free)
        pl.BlockSpec((1, tn), lambda i, j, k: (0, j)),
    ]
    args = [a, b, s_p, t_p]

    if residual is not None:
        r = residual.astype(jnp.bfloat16)
        if (Mp, Np) != (M, N):
            r = jnp.zeros((Mp, Np), jnp.bfloat16).at[:M, :N].set(r)
        in_specs.append(pl.BlockSpec((tm, tn), lambda i, j, k: (i, j)))
        args.append(r)

    out = pl.pallas_call(
        _make_matmul_kernel(relu, residual is not None, multi_k),
        out_shape=jax.ShapeDtypeStruct((Mp, Np), out_dtype),
        grid_spec=pltpu.PrefetchScalarGridSpec(
            num_scalar_prefetch=0,
            grid=(Mp // tm, Np // tn, k_steps),
            in_specs=in_specs,
            out_specs=pl.BlockSpec((tm, tn), lambda i, j, k: (i, j)),
            scratch_shapes=[pltpu.VMEM((tm, tn), jnp.float32)] if multi_k else [],
        ),
        compiler_params=pltpu.CompilerParams(
            dimension_semantics=("parallel", "parallel", "arbitrary"),
            vmem_limit_bytes=_VMEM_LIMIT,
        ),
    )(*args)
    return out[:M, :N]


@functools.partial(jax.jit, static_argnames=("padding", "relu", "out_dtype"))
def _conv_s1_fused(x, w, scale, bias, *, padding, relu, out_dtype=jnp.bfloat16):
    """Stride-1 KxK conv + folded BN (+ReLU) with NO materialized im2col patch matrix.

    Padded activation viewed as flat rows (N*Hp*Wp, C); tap (di,dj) = rows shifted by di*Wp+dj.
    Output is computed 'wide/tall' (at every padded position) and cropped in glue -- only
    positions that are cropped away ever read across row/image boundaries, so kept outputs are
    exact.  Extra HBM input read is only the small halo block per row tile.
    """
    N, H, W, C = x.shape
    kh, kw, _, Cout = w.shape
    if padding > 0:
        x = jnp.pad(x, ((0, 0), (padding, padding), (padding, padding), (0, 0)))
    Hp, Wp = H + 2 * padding, W + 2 * padding
    Ho, Wo = Hp - kh + 1, Wp - kw + 1

    Mtall = N * Hp * Wp
    halo = (kh - 1) * Wp + (kw - 1)
    tM, H2, nb = _plan_row_blocks(Mtall, halo, C)
    R_pad = nb * tM + H2

    xf = x.astype(jnp.bfloat16).reshape(Mtall, C)
    xf = jnp.pad(xf, ((0, R_pad - Mtall), (0, 0)))
    w2 = w.reshape(kh * kw * C, Cout).astype(jnp.bfloat16)
    s_p = scale.astype(jnp.float32).reshape(1, Cout)
    t_p = bias.astype(jnp.float32).reshape(1, Cout)

    tn = 256 if Cout >= 512 else Cout
    nj = Cout // tn
    offsets = tuple(di * Wp + dj for di in range(kh) for dj in range(kw))

    out = pl.pallas_call(
        _make_shift_conv_kernel(tM, H2, C, offsets, relu),
        out_shape=jax.ShapeDtypeStruct((nb * tM, Cout), out_dtype),
        grid_spec=pltpu.PrefetchScalarGridSpec(
            num_scalar_prefetch=0,
            grid=(nj, nb),   # cout outer (weights stay VMEM-resident), row blocks stream inner
            in_specs=[
                pl.BlockSpec((tM, C), lambda j, i: (i, 0)),
                pl.BlockSpec((H2, C), lambda j, i: ((i + 1) * (tM // H2), 0)),  # halo block
                pl.BlockSpec((kh * kw * C, tn), lambda j, i: (0, j)),
                pl.BlockSpec((1, tn), lambda j, i: (0, j)),
                pl.BlockSpec((1, tn), lambda j, i: (0, j)),
            ],
            out_specs=pl.BlockSpec((tM, tn), lambda j, i: (i, j)),
            scratch_shapes=[
                pltpu.VMEM((tM + H2, C), jnp.bfloat16),
                pltpu.VMEM((tM, tn), jnp.float32),
            ],
        ),
        compiler_params=pltpu.CompilerParams(
            dimension_semantics=("parallel", "parallel"),
            vmem_limit_bytes=_VMEM_LIMIT,
        ),
    )(xf, xf, w2, s_p, t_p)

    return out[:Mtall].reshape(N, Hp, Wp, Cout)[:, :Ho, :Wo, :]


@jax.jit
def maxpool_3x3_s2_p1(x):
    """3x3/2 max-pool (pad 1): one-pass Pallas stride-1 9-tap max over the padded activation
    (flat-row + halo blocks, padded input read ~once) followed by a glue stride-2 subsample.
    Replaces the previous 9 materialized strided (M, C) views."""
    N, H, W, C = x.shape
    k, stride, pad = 3, 2, 1
    xp = jnp.pad(x, ((0, 0), (pad, pad), (pad, pad), (0, 0)), constant_values=-jnp.inf)
    Hp, Wp = H + 2 * pad, W + 2 * pad
    Ho = (Hp - k) // stride + 1
    Wo = (Wp - k) // stride + 1

    Mtall = N * Hp * Wp
    halo = (k - 1) * Wp + (k - 1)
    tM, H2, nb = _plan_row_blocks(Mtall, halo, C)
    R_pad = nb * tM + H2

    xf = xp.reshape(Mtall, C)
    xf = jnp.pad(xf, ((0, R_pad - Mtall), (0, 0)), constant_values=-jnp.inf)
    offsets = tuple(di * Wp + dj for di in range(k) for dj in range(k))

    out = pl.pallas_call(
        _make_shift_max_kernel(tM, H2, offsets),
        out_shape=jax.ShapeDtypeStruct((nb * tM, C), x.dtype),
        grid_spec=pltpu.PrefetchScalarGridSpec(
            num_scalar_prefetch=0,
            grid=(nb,),
            in_specs=[
                pl.BlockSpec((tM, C), lambda i: (i, 0)),
                pl.BlockSpec((H2, C), lambda i: ((i + 1) * (tM // H2), 0)),
            ],
            out_specs=pl.BlockSpec((tM, C), lambda i: (i, 0)),
            scratch_shapes=[pltpu.VMEM((tM + H2, C), x.dtype)],
        ),
        compiler_params=pltpu.CompilerParams(
            dimension_semantics=("parallel",),
            vmem_limit_bytes=_VMEM_LIMIT,
        ),
    )(xf, xf)

    m1 = out[:Mtall].reshape(N, Hp, Wp, C)
    # stride-2 subsample of the stride-1 max == the 3x3/2 pooled output
    return m1[:, 0:2 * Ho - 1:2, 0:2 * Wo - 1:2, :]


@jax.jit
def l2_normalize(x):
    B, D = x.shape
    Bp = _round_up(B, 8)
    Dp = _round_up(D, 128)
    x = x.astype(jnp.float32)
    if (Bp, Dp) != (B, D):
        x = jnp.zeros((Bp, Dp), jnp.float32).at[:B, :D].set(x)
    tb = 256 if (Bp % 256 == 0 and Bp > 256) else Bp
    out = pl.pallas_call(
        _l2norm_kernel,
        out_shape=jax.ShapeDtypeStruct((Bp, Dp), jnp.float32),
        grid=(Bp // tb,),
        in_specs=[pl.BlockSpec((tb, Dp), lambda i: (i, 0))],
        out_specs=pl.BlockSpec((tb, Dp), lambda i: (i, 0)),
        compiler_params=pltpu.CompilerParams(
            dimension_semantics=("parallel",), vmem_limit_bytes=_VMEM_LIMIT
        ),
    )(x)
    return out[:B, :D]


# ----------------------------------------------------------------------------
# Conv + BN (eval mode, folded)
# ----------------------------------------------------------------------------
def conv_bn(x, p, stride=1, padding=0, relu=True, residual=None, out_dtype=jnp.bfloat16):
    """x: NHWC (bf16), p: dict(w=(kh,kw,cin,cout), scale, bias). Returns NHWC."""
    w, scale, bias = p["w"], p["scale"], p["bias"]
    N, H, W, C = x.shape
    kh, kw, cin, cout = w.shape

    if kh == 1 and kw == 1:
        # 1x1 conv: plain fused matmul (ResNet 1x1 convs have no padding)
        xs = x[:, ::stride, ::stride, :] if stride > 1 else x
        Ho, Wo = xs.shape[1], xs.shape[2]
        patches = xs.reshape(N * Ho * Wo, cin)
        wmat = w.reshape(cin, cout)
        res2 = None if residual is None else residual.reshape(N * Ho * Wo, cout)
        y = matmul_scale_bias(patches, wmat, scale, bias, res2, relu=relu, out_dtype=out_dtype)
        return y.reshape(N, Ho, Wo, cout)

    if stride == 1:
        # fused shifted-tap conv (no patch matrix); residual never lands on a 3x3 conv in ResNet
        assert residual is None
        return _conv_s1_fused(x, w, scale, bias, padding=padding, relu=relu, out_dtype=out_dtype)

    # TODO(synk): strided convs (7x7/2 stem, the three 3x3/2) still materialize an im2col patch
    # matrix; they are ~4/53 convs and run at 1/4 output resolution.
    if padding > 0:
        x = jnp.pad(x, ((0, 0), (padding, padding), (padding, padding), (0, 0)))
    Hp, Wp = x.shape[1], x.shape[2]
    Ho = (Hp - kh) // stride + 1
    Wo = (Wp - kw) // stride + 1
    cols = []
    for i in range(kh):
        for j in range(kw):
            cols.append(x[:, i:i + Ho * stride:stride, j:j + Wo * stride:stride, :])
    patches = jnp.concatenate(cols, axis=-1).reshape(N * Ho * Wo, kh * kw * cin)
    wmat = w.reshape(kh * kw * cin, cout)
    res2 = None if residual is None else residual.reshape(N * Ho * Wo, cout)
    y = matmul_scale_bias(patches, wmat, scale, bias, res2, relu=relu, out_dtype=out_dtype)
    return y.reshape(N, Ho, Wo, cout)


# ----------------------------------------------------------------------------
# Deterministic parameter construction (synthetic, PRNGKey(0)-derived)
# ----------------------------------------------------------------------------
class ParamGen:
    def __init__(self, seed=0):
        self.key = jax.random.PRNGKey(seed)

    def next(self):
        self.key, sub = jax.random.split(self.key)
        return sub


def make_conv_bn(pg, kh, kw, cin, cout):
    std = (2.0 / (kh * kw * cin)) ** 0.5
    w = std * jax.random.normal(pg.next(), (kh, kw, cin, cout), jnp.float32)
    gamma = 1.0 + 0.1 * jax.random.normal(pg.next(), (cout,), jnp.float32)
    beta = 0.1 * jax.random.normal(pg.next(), (cout,), jnp.float32)
    rmean = 0.1 * jax.random.normal(pg.next(), (cout,), jnp.float32)
    rvar = 1.0 + 0.1 * jnp.abs(jax.random.normal(pg.next(), (cout,), jnp.float32))
    eps = 1e-5
    scale = gamma / jnp.sqrt(rvar + eps)
    bias = beta - rmean * scale
    return dict(w=w, scale=scale, bias=bias)


def make_bottleneck(pg, cin, planes, stride):
    p = dict(
        c1=make_conv_bn(pg, 1, 1, cin, planes),
        c2=make_conv_bn(pg, 3, 3, planes, planes),
        c3=make_conv_bn(pg, 1, 1, planes, planes * 4),
        stride=stride,
    )
    if stride != 1 or cin != planes * 4:
        p["down"] = make_conv_bn(pg, 1, 1, cin, planes * 4)
    return p


def make_resnet50_params(pg, embedding_dim):
    params = {"conv1": make_conv_bn(pg, 7, 7, 3, 64)}
    layers = []
    cin = 64
    for planes, nblocks, stride in [(64, 3, 1), (128, 4, 2), (256, 6, 2), (512, 3, 2)]:
        blocks = []
        for b in range(nblocks):
            blocks.append(make_bottleneck(pg, cin, planes, stride if b == 0 else 1))
            cin = planes * 4
        layers.append(blocks)
    params["layers"] = layers

    feat_dim = 2048  # resnet50 fc.in_features
    bound = (1.0 / feat_dim) ** 0.5
    params["projector"] = dict(
        w1=jax.random.uniform(pg.next(), (feat_dim, feat_dim), jnp.float32, -bound, bound),
        b1=jax.random.uniform(pg.next(), (feat_dim,), jnp.float32, -bound, bound),
        w2=jax.random.uniform(pg.next(), (feat_dim, embedding_dim), jnp.float32, -bound, bound),
        b2=jax.random.uniform(pg.next(), (embedding_dim,), jnp.float32, -bound, bound),
    )
    params["feat_dim"] = feat_dim
    return params


# ----------------------------------------------------------------------------
# Forward pass (mirrors ResNet.forward)
# ----------------------------------------------------------------------------
def bottleneck_forward(x, p):
    s = p["stride"]
    out = conv_bn(x, p["c1"], stride=1, padding=0, relu=True)
    out = conv_bn(out, p["c2"], stride=s, padding=1, relu=True)
    if "down" in p:
        identity = conv_bn(x, p["down"], stride=s, padding=0, relu=False)
    else:
        identity = x
    # residual add + ReLU fused into the c3 matmul epilogue
    return conv_bn(out, p["c3"], stride=1, padding=0, relu=True, residual=identity)


def resnet_forward(x_nchw, params, use_norm=True):
    # Input follows the PyTorch NCHW convention; kernels run in NHWC / bf16 activations.
    x = jnp.transpose(x_nchw, (0, 2, 3, 1)).astype(jnp.bfloat16)

    x = conv_bn(x, params["conv1"], stride=2, padding=3, relu=True)
    x = maxpool_3x3_s2_p1(x)

    for blocks in params["layers"]:
        for bp in blocks:
            x = bottleneck_forward(x, bp)

    # adaptive avg pool to 1x1 (trivial spatial mean kept in glue, f32)
    f = jnp.mean(x.astype(jnp.float32), axis=(1, 2))  # (N, 2048) == f.view(-1, feat_dim)

    if use_norm:
        f = l2_normalize(f)

    pj = params["projector"]
    ones1 = jnp.ones((pj["w1"].shape[1],), jnp.float32)
    ones2 = jnp.ones((pj["w2"].shape[1],), jnp.float32)
    h = matmul_scale_bias(f, pj["w1"], ones1, pj["b1"], relu=True, out_dtype=jnp.float32)
    g = matmul_scale_bias(h, pj["w2"], ones2, pj["b2"], relu=False, out_dtype=jnp.float32)

    if use_norm:
        return f, l2_normalize(g)
    return f, g


# ----------------------------------------------------------------------------
if __name__ == "__main__":
    embedding_dim = 128
    pg = ParamGen(0)
    params = make_resnet50_params(pg, embedding_dim)

    key = jax.random.PRNGKey(0)
    x = jax.random.normal(key, (2, 3, 32, 32), jnp.float32)  # NCHW, like PyTorch

    f, g = resnet_forward(x, params, use_norm=True)
    jax.block_until_ready((f, g))

    assert f.shape == (2, params["feat_dim"])
    assert g.shape == (2, embedding_dim)
    assert bool(jnp.all(jnp.isfinite(f))) and bool(jnp.all(jnp.isfinite(g)))
    print("KERNEL_OK")
</pallas_src>

<mosaic_0001>
module attributes {stable_mosaic.version = 11 : i64} {
  func.func @kernel(%arg0: i32, %arg1: i32, %arg2: i32, %arg3: memref<512x256xbf16, #tpu.memory_space<vmem>>, %arg4: memref<256x128xbf16, #tpu.memory_space<vmem>>, %arg5: memref<1x128xf32, #tpu.memory_space<vmem>>, %arg6: memref<1x128xf32, #tpu.memory_space<vmem>>, %arg7: memref<512x128xbf16, #tpu.memory_space<vmem>>) attributes {dimension_semantics = [#tpu.dimension_semantics<parallel>, #tpu.dimension_semantics<parallel>, #tpu.dimension_semantics<arbitrary>], iteration_bounds = array<i64: 1, 1, 1>, scalar_prefetch = 0 : i64, scratch_operands = 0 : i64, tpu.core_type = #tpu.core_type<tc>, window_params = [{transform_indices = @transform_0, window_bounds = array<i64: 512, 256>}, {transform_indices = @transform_1, window_bounds = array<i64: 256, 128>}, {transform_indices = @transform_2, window_bounds = array<i64: 1, 128>}, {transform_indices = @transform_3, window_bounds = array<i64: 1, 128>}, {transform_indices = @transform_4, window_bounds = array<i64: 512, 128>}]} {
    %c0 = arith.constant 0 : index
    %c0_0 = arith.constant 0 : index
    %0 = vector.load %arg3[%c0, %c0_0] : memref<512x256xbf16, #tpu.memory_space<vmem>>, vector<512x256xbf16>
    %c0_1 = arith.constant 0 : index
    %c0_2 = arith.constant 0 : index
    %1 = vector.load %arg4[%c0_1, %c0_2] : memref<256x128xbf16, #tpu.memory_space<vmem>>, vector<256x128xbf16>
    %cst = arith.constant dense<0.000000e+00> : vector<512x128xf32>
    %2 = tpu.matmul %0, %1, %cst {dimension_numbers = #tpu.dot_dimension_numbers<[1], [0], [0], [1], [0, 0, 1, 1], [], []>} : vector<512x256xbf16>, vector<256x128xbf16>, vector<512x128xf32> -> vector<512x128xf32>
    %c0_3 = arith.constant 0 : index
    %c0_4 = arith.constant 0 : index
    %3 = vector.load %arg5[%c0_3, %c0_4] : memref<1x128xf32, #tpu.memory_space<vmem>>, vector<1x128xf32>
    %4 = vector.broadcast %3 : vector<1x128xf32> to vector<512x128xf32>
    %5 = arith.mulf %2, %4 : vector<512x128xf32>
    %c0_5 = arith.constant 0 : index
    %c0_6 = arith.constant 0 : index
    %6 = vector.load %arg6[%c0_5, %c0_6] : memref<1x128xf32, #tpu.memory_space<vmem>>, vector<1x128xf32>
    %7 = vector.broadcast %6 : vector<1x128xf32> to vector<512x128xf32>
    %8 = arith.addf %5, %7 : vector<512x128xf32>
    %cst_7 = arith.constant 0.000000e+00 : f32
    %9 = vector.broadcast %cst_7 : f32 to vector<512x128xf32>
    %10 = arith.maximumf %8, %9 : vector<512x128xf32>
    %11 = arith.truncf %10 : vector<512x128xf32> to vector<512x128xbf16>
    %c0_8 = arith.constant 0 : index
    %c0_9 = arith.constant 0 : index
    %12 = vector.load %arg7[%c0_8, %c0_9] : memref<512x128xbf16, #tpu.memory_space<vmem>>, vector<512x128xbf16>
    tpu.vector_store %arg7[%c0_8, %c0_9], %11 {strides = array<i32>} : memref<512x128xbf16, #tpu.memory_space<vmem>>, vector<512x128xbf16>,
    return
  }
  func.func @transform_0(%arg0: i32, %arg1: i32, %arg2: i32) -> (i32, i32) {
    %c0_i32 = arith.constant 0 : i32
    return %arg0, %arg2 : i32, i32
  }
  func.func @transform_1(%arg0: i32, %arg1: i32, %arg2: i32) -> (i32, i32) {
    %c0_i32 = arith.constant 0 : i32
    return %arg2, %arg1 : i32, i32
  }
  func.func @transform_2(%arg0: i32, %arg1: i32, %arg2: i32) -> (i32, i32) {
    %c0_i32 = arith.constant 0 : i32
    %c0_i32_0 = arith.constant 0 : i32
    return %c0_i32, %arg1 : i32, i32
  }
  func.func @transform_3(%arg0: i32, %arg1: i32, %arg2: i32) -> (i32, i32) {
    %c0_i32 = arith.constant 0 : i32
    %c0_i32_0 = arith.constant 0 : i32
    return %c0_i32, %arg1 : i32, i32
  }
  func.func @transform_4(%arg0: i32, %arg1: i32, %arg2: i32) -> (i32, i32) {
    %c0_i32 = arith.constant 0 : i32
    return %arg0, %arg1 : i32, i32
  }
}

</mosaic_0001>

<llo_original>
// kernel: matmul_scale_bias.1
$region0: #{matmul_scale_bias.1}
  #allocation0 [shape = 'u32[]', space=smem, size = 0x4, offset = 0x4, fixed_abs, tag = 'smem constant byte address 0x4 - core index']
  #allocation1 [shape = 'u32[144,128]{1,0:T(1,128)}', space=vmem, size = 0x12000, scoped, tag = 'internal scratch']
  %s0 = inlined_call_operand.vmem [shape: bf16[512,256], index: 0, kind: input, shape index: {}]
  %s1 = inlined_call_operand.vmem [shape: bf16[256,128], index: 1, kind: input, shape index: {}]
  %s2 = inlined_call_operand.vmem [shape: f32[1,128], index: 2, kind: input, shape index: {}]
  %s3 = inlined_call_operand.vmem [shape: f32[1,128], index: 3, kind: input, shape index: {}]
  %s4 = inlined_call_operand.vmem [shape: bf16[512,128], index: 4, kind: output, shape index: {}]
  %s5 = sld [smem:[#allocation0]]
  $region26: #{matmul_scale_bias.1} parent=0
    _
  %s7 = ssub.s32 1, %s5
  %s8 = scalar_select 0, %s7, %s5
  // Predicated region
  $region2: #{matmul_scale_bias.1} parent=0 // pred_check
    _
  $region3: #{matmul_scale_bias.1} parent=0 // pred_check_branch
    %10 = sbr.rel (0) target = $region5
  $region4: #{matmul_scale_bias.1} parent=0 // pred_region
    _
  $region5: #{matmul_scale_bias.1} parent=0 // pred_fallthru
    _
  // Predicated region
  $region6: #{matmul_scale_bias.1} parent=0 // pred_check
    _
  $region7: #{matmul_scale_bias.1} parent=0 // pred_check_branch
    %12 = sbr.rel (0) target = $region9
  $region8: #{matmul_scale_bias.1} parent=0 // pred_region
    _
  $region9: #{matmul_scale_bias.1} parent=0 // pred_fallthru
    _
  // Predicated region
  $region10: #{matmul_scale_bias.1} parent=0 // pred_check
    _
  $region11: #{matmul_scale_bias.1} parent=0 // pred_check_branch
    %14 = sbr.rel (0) target = $region13
  $region12: #{matmul_scale_bias.1} parent=0 // pred_region
    _
  $region13: #{matmul_scale_bias.1} parent=0 // pred_fallthru
    _
  // Predicated region
  $region14: #{matmul_scale_bias.1} parent=0 // pred_check
    _
  $region15: #{matmul_scale_bias.1} parent=0 // pred_check_branch
    %16 = sbr.rel (0) target = $region17
  $region16: #{matmul_scale_bias.1} parent=0 // pred_region
    _
  $region17: #{matmul_scale_bias.1} parent=0 // pred_fallthru
    _
  %v18 = vld [vmem:[%s0] sm:$0xff]
  %v19 = vld [vmem:[%s0 + $0x8] sm:$0xff]
  %v20 = vld [vmem:[%s0 + $0x10] sm:$0xff]
  %v21 = vld [vmem:[%s0 + $0x18] sm:$0xff]
  %v22 = vld [vmem:[%s0 + $0x20] sm:$0xff]
  %v23 = vld [vmem:[%s0 + $0x28] sm:$0xff]
  %v24 = vld [vmem:[%s0 + $0x30] sm:$0xff]
  %v25 = vld [vmem:[%s0 + $0x38] sm:$0xff]
  %v26 = vld [vmem:[%s0 + $0x40] sm:$0xff]
  %v27 = vld [vmem:[%s0 + $0x48] sm:$0xff]
  %v28 = vld [vmem:[%s0 + $0x50] sm:$0xff]
  %v29 = vld [vmem:[%s0 + $0x58] sm:$0xff]
  %v30 = vld [vmem:[%s0 + $0x60] sm:$0xff]
  %v31 = vld [vmem:[%s0 + $0x68] sm:$0xff]
  %v32 = vld [vmem:[%s0 + $0x70] sm:$0xff]
  %v33 = vld [vmem:[%s0 + $0x78] sm:$0xff]
  %v34 = vld [vmem:[%s0 + $0x80] sm:$0xff]
  %v35 = vld [vmem:[%s0 + $0x88] sm:$0xff]
  %v36 = vld [vmem:[%s0 + $0x90] sm:$0xff]
  %v37 = vld [vmem:[%s0 + $0x98] sm:$0xff]
  %v38 = vld [vmem:[%s0 + $0xa0] sm:$0xff]
  %v39 = vld [vmem:[%s0 + $0xa8] sm:$0xff]
  %v40 = vld [vmem:[%s0 + $0xb0] sm:$0xff]
  %v41 = vld [vmem:[%s0 + $0xb8] sm:$0xff]
  %v42 = vld [vmem:[%s0 + $0xc0] sm:$0xff]
  %v43 = vld [vmem:[%s0 + $0xc8] sm:$0xff]
  %v44 = vld [vmem:[%s0 + $0xd0] sm:$0xff]
  %v45 = vld [vmem:[%s0 + $0xd8] sm:$0xff]
  %v46 = vld [vmem:[%s0 + $0xe0] sm:$0xff]
  %v47 = vld [vmem:[%s0 + $0xe8] sm:$0xff]
  %v48 = vld [vmem:[%s0 + $0xf0] sm:$0xff]
  %v49 = vld [vmem:[%s0 + $0xf8] sm:$0xff]
  %v50 = vld [vmem:[%s0 + $0x100] sm:$0xff]
  %v51 = vld [vmem:[%s0 + $0x108] sm:$0xff]
  %v52 = vld [vmem:[%s0 + $0x110] sm:$0xff]
  %v53 = vld [vmem:[%s0 + $0x118] sm:$0xff]
  %v54 = vld [vmem:[%s0 + $0x120] sm:$0xff]
  %v55 = vld [vmem:[%s0 + $0x128] sm:$0xff]
  %v56 = vld [vmem:[%s0 + $0x130] sm:$0xff]
  %v57 = vld [vmem:[%s0 + $0x138] sm:$0xff]
  %v58 = vld [vmem:[%s0 + $0x140] sm:$0xff]
  %v59 = vld [vmem:[%s0 + $0x148] sm:$0xff]
  %v60 = vld [vmem:[%s0 + $0x150] sm:$0xff]
  %v61 = vld [vmem:[%s0 + $0x158] sm:$0xff]
  %v62 = vld [vmem:[%s0 + $0x160] sm:$0xff]
  %v63 = vld [vmem:[%s0 + $0x168] sm:$0xff]
  %v64 = vld [vmem:[%s0 + $0x170] sm:$0xff]
  %v65 = vld [vmem:[%s0 + $0x178] sm:$0xff]
  %v66 = vld [vmem:[%s0 + $0x180] sm:$0xff]
  %v67 = vld [vmem:[%s0 + $0x188] sm:$0xff]
  %v68 = vld [vmem:[%s0 + $0x190] sm:$0xff]
  %v69 = vld [vmem:[%s0 + $0x198] sm:$0xff]
  %v70 = vld [vmem:[%s0 + $0x1a0] sm:$0xff]
  %v71 = vld [vmem:[%s0 + $0x1a8] sm:$0xff]
  %v72 = vld [vmem:[%s0 + $0x1b0] sm:$0xff]
  %v73 = vld [vmem:[%s0 + $0x1b8] sm:$0xff]
  %v74 = vld [vmem:[%s0 + $0x1c0] sm:$0xff]
  %v75 = vld [vmem:[%s0 + $0x1c8] sm:$0xff]
  %v76 = vld [vmem:[%s0 + $0x1d0] sm:$0xff]
  %v77 = vld [vmem:[%s0 + $0x1d8] sm:$0xff]
  %v78 = vld [vmem:[%s0 + $0x1e0] sm:$0xff]
  %v79 = vld [vmem:[%s0 + $0x1e8] sm:$0xff]
  %v80 = vld [vmem:[%s0 + $0x1f0] sm:$0xff]
  %v81 = vld [vmem:[%s0 + $0x1f8] sm:$0xff]
  %v82 = vld [vmem:[%s1] sm:$0xf]
  %v83 = vld [vmem:[%s1 + $0x4] sm:$0xf]
  %v84 = vld [vmem:[%s1 + $0x8] sm:$0xf]
  %v85 = vld [vmem:[%s1 + $0xc] sm:$0xf]
  %v86 = vld [vmem:[%s1 + $0x10] sm:$0xf]
  %v87 = vld [vmem:[%s1 + $0x14] sm:$0xf]
  %v88 = vld [vmem:[%s1 + $0x18] sm:$0xf]
  %v89 = vld [vmem:[%s1 + $0x1c] sm:$0xf]
  %v90 = vld [vmem:[%s1 + $0x20] sm:$0xf]
  %v91 = vld [vmem:[%s1 + $0x24] sm:$0xf]
  %v92 = vld [vmem:[%s1 + $0x28] sm:$0xf]
  %v93 = vld [vmem:[%s1 + $0x2c] sm:$0xf]
  %v94 = vld [vmem:[%s1 + $0x30] sm:$0xf]
  %v95 = vld [vmem:[%s1 + $0x34] sm:$0xf]
  %v96 = vld [vmem:[%s1 + $0x38] sm:$0xf]
  %v97 = vld [vmem:[%s1 + $0x3c] sm:$0xf]
  %v98 = vld [vmem:[%s1 + $0x40] sm:$0xf]
  %v99 = vld [vmem:[%s1 + $0x44] sm:$0xf]
  %v100 = vld [vmem:[%s1 + $0x48] sm:$0xf]
  %v101 = vld [vmem:[%s1 + $0x4c] sm:$0xf]
  %v102 = vld [vmem:[%s1 + $0x50] sm:$0xf]
  %v103 = vld [vmem:[%s1 + $0x54] sm:$0xf]
  %v104 = vld [vmem:[%s1 + $0x58] sm:$0xf]
  %v105 = vld [vmem:[%s1 + $0x5c] sm:$0xf]
  %v106 = vld [vmem:[%s1 + $0x60] sm:$0xf]
  %v107 = vld [vmem:[%s1 + $0x64] sm:$0xf]
  %v108 = vld [vmem:[%s1 + $0x68] sm:$0xf]
  %v109 = vld [vmem:[%s1 + $0x6c] sm:$0xf]
  %v110 = vld [vmem:[%s1 + $0x70] sm:$0xf]
  %v111 = vld [vmem:[%s1 + $0x74] sm:$0xf]
  %v112 = vld [vmem:[%s1 + $0x78] sm:$0xf]
  %v113 = vld [vmem:[%s1 + $0x7c] sm:$0xf]
  %v178 = vunpack.c.l.b16 %v18
  %v179 = vunpack.c.h.b16 %v18
  %v180 = vunpack.c.l.b16 %v19
  %v181 = vunpack.c.h.b16 %v19
  %v182 = vunpack.c.l.b16 %v20
  %v183 = vunpack.c.h.b16 %v20
  %v184 = vunpack.c.l.b16 %v21
  %v185 = vunpack.c.h.b16 %v21
  %v186 = vunpack.c.l.b16 %v22
  %v187 = vunpack.c.h.b16 %v22
  %v188 = vunpack.c.l.b16 %v23
  %v189 = vunpack.c.h.b16 %v23
  %v190 = vunpack.c.l.b16 %v24
  %v191 = vunpack.c.h.b16 %v24
  %v192 = vunpack.c.l.b16 %v25
  %v193 = vunpack.c.h.b16 %v25
  %v194 = vunpack.c.l.b16 %v26
  %v195 = vunpack.c.h.b16 %v26
  %v196 = vunpack.c.l.b16 %v27
  %v197 = vunpack.c.h.b16 %v27
  %v198 = vunpack.c.l.b16 %v28
  %v199 = vunpack.c.h.b16 %v28
  %v200 = vunpack.c.l.b16 %v29
  %v201 = vunpack.c.h.b16 %v29
  %v202 = vunpack.c.l.b16 %v30
  %v203 = vunpack.c.h.b16 %v30
  %v204 = vunpack.c.l.b16 %v31
  %v205 = vunpack.c.h.b16 %v31
  %v206 = vunpack.c.l.b16 %v32
  %v207 = vunpack.c.h.b16 %v32
  %v208 = vunpack.c.l.b16 %v33
  %v209 = vunpack.c.h.b16 %v33
  %v210 = vunpack.c.l.b16 %v34
  %v211 = vunpack.c.h.b16 %v34
  %v212 = vunpack.c.l.b16 %v35
  %v213 = vunpack.c.h.b16 %v35
  %v214 = vunpack.c.l.b16 %v36
  %v215 = vunpack.c.h.b16 %v36
  %v216 = vunpack.c.l.b16 %v37
  %v217 = vunpack.c.h.b16 %v37
  %v218 = vunpack.c.l.b16 %v38
  %v219 = vunpack.c.h.b16 %v38
  %v220 = vunpack.c.l.b16 %v39
  %v221 = vunpack.c.h.b16 %v39
  %v222 = vunpack.c.l.b16 %v40
  %v223 = vunpack.c.h.b16 %v40
  %v224 = vunpack.c.l.b16 %v41
  %v225 = vunpack.c.h.b16 %v41
  %v226 = vunpack.c.l.b16 %v42
  %v227 = vunpack.c.h.b16 %v42
  %v228 = vunpack.c.l.b16 %v43
  %v229 = vunpack.c.h.b16 %v43
  %v230 = vunpack.c.l.b16 %v44
  %v231 = vunpack.c.h.b16 %v44
  %v232 = vunpack.c.l.b16 %v45
  %v233 = vunpack.c.h.b16 %v45
  %v234 = vunpack.c.l.b16 %v46
  %v235 = vunpack.c.h.b16 %v46
  %v236 = vunpack.c.l.b16 %v47
  %v237 = vunpack.c.h.b16 %v47
  %v238 = vunpack.c.l.b16 %v48
  %v239 = vunpack.c.h.b16 %v48
  %v240 = vunpack.c.l.b16 %v49
  %v241 = vunpack.c.h.b16 %v49
  %v242 = vunpack.c.l.b16 %v50
  %v243 = vunpack.c.h.b16 %v50
  %v244 = vunpack.c.l.b16 %v51
  %v245 = vunpack.c.h.b16 %v51
  %v246 = vunpack.c.l.b16 %v52
  %v247 = vunpack.c.h.b16 %v52
  %v248 = vunpack.c.l.b16 %v53
  %v249 = vunpack.c.h.b16 %v53
  %v250 = vunpack.c.l.b16 %v54
  %v251 = vunpack.c.h.b16 %v54
  %v252 = vunpack.c.l.b16 %v55
  %v253 = vunpack.c.h.b16 %v55
  %v254 = vunpack.c.l.b16 %v56
  %v255 = vunpack.c.h.b16 %v56
  %v256 = vunpack.c.l.b16 %v57
  %v257 = vunpack.c.h.b16 %v57
  %v258 = vunpack.c.l.b16 %v58
  %v259 = vunpack.c.h.b16 %v58
  %v260 = vunpack.c.l.b16 %v59
  %v261 = vunpack.c.h.b16 %v59
  %v262 = vunpack.c.l.b16 %v60
  %v263 = vunpack.c.h.b16 %v60
  %v264 = vunpack.c.l.b16 %v61
  %v265 = vunpack.c.h.b16 %v61
  %v266 = vunpack.c.l.b16 %v62
  %v267 = vunpack.c.h.b16 %v62
  %v268 = vunpack.c.l.b16 %v63
  %v269 = vunpack.c.h.b16 %v63
  %v270 = vunpack.c.l.b16 %v64
  %v271 = vunpack.c.h.b16 %v64
  %v272 = vunpack.c.l.b16 %v65
  %v273 = vunpack.c.h.b16 %v65
  %v274 = vunpack.c.l.b16 %v66
  %v275 = vunpack.c.h.b16 %v66
  %v276 = vunpack.c.l.b16 %v67
  %v277 = vunpack.c.h.b16 %v67
  %v278 = vunpack.c.l.b16 %v68
  %v279 = vunpack.c.h.b16 %v68
  %v280 = vunpack.c.l.b16 %v69
  %v281 = vunpack.c.h.b16 %v69
  %v282 = vunpack.c.l.b16 %v70
  %v283 = vunpack.c.h.b16 %v70
  %v284 = vunpack.c.l.b16 %v71
  %v285 = vunpack.c.h.b16 %v71
  %v286 = vunpack.c.l.b16 %v72
  %v287 = vunpack.c.h.b16 %v72
  %v288 = vunpack.c.l.b16 %v73
  %v289 = vunpack.c.h.b16 %v73
  %v290 = vunpack.c.l.b16 %v74
  %v291 = vunpack.c.h.b16 %v74
  %v292 = vunpack.c.l.b16 %v75
  %v293 = vunpack.c.h.b16 %v75
  %v294 = vunpack.c.l.b16 %v76
  %v295 = vunpack.c.h.b16 %v76
  %v296 = vunpack.c.l.b16 %v77
  %v297 = vunpack.c.h.b16 %v77
  %v298 = vunpack.c.l.b16 %v78
  %v299 = vunpack.c.h.b16 %v78
  %v300 = vunpack.c.l.b16 %v79
  %v301 = vunpack.c.h.b16 %v79
  %v302 = vunpack.c.l.b16 %v80
  %v303 = vunpack.c.h.b16 %v80
  %v304 = vunpack.c.l.b16 %v81
  %v305 = vunpack.c.h.b16 %v81
  %v306 = vpack.c.b16 %v180, %v178
  %v307 = vpack.c.b16 %v181, %v179
  %v308 = vpack.c.b16 %v184, %v182
  %v309 = vpack.c.b16 %v185, %v183
  %v310 = vpack.c.b16 %v188, %v186
  %v311 = vpack.c.b16 %v189, %v187
  %v312 = vpack.c.b16 %v192, %v190
  %v313 = vpack.c.b16 %v193, %v191
  %v314 = vpack.c.b16 %v196, %v194
  %v315 = vpack.c.b16 %v197, %v195
  %v316 = vpack.c.b16 %v200, %v198
  %v317 = vpack.c.b16 %v201, %v199
  %v318 = vpack.c.b16 %v204, %v202
  %v319 = vpack.c.b16 %v205, %v203
  %v320 = vpack.c.b16 %v208, %v206
  %v321 = vpack.c.b16 %v209, %v207
  %v322 = vpack.c.b16 %v212, %v210
  %v323 = vpack.c.b16 %v213, %v211
  %v324 = vpack.c.b16 %v216, %v214
  %v325 = vpack.c.b16 %v217, %v215
  %v326 = vpack.c.b16 %v220, %v218
  %v327 = vpack.c.b16 %v221, %v219
  %v328 = vpack.c.b16 %v224, %v222
  %v329 = vpack.c.b16 %v225, %v223
  %v330 = vpack.c.b16 %v228, %v226
  %v331 = vpack.c.b16 %v229, %v227
  %v332 = vpack.c.b16 %v232, %v230
  %v333 = vpack.c.b16 %v233, %v231
  %v334 = vpack.c.b16 %v236, %v234
  %v335 = vpack.c.b16 %v237, %v235
  %v336 = vpack.c.b16 %v240, %v238
  %v337 = vpack.c.b16 %v241, %v239
  %v338 = vpack.c.b16 %v244, %v242
  %v339 = vpack.c.b16 %v245, %v243
  %v340 = vpack.c.b16 %v248, %v246
  %v341 = vpack.c.b16 %v249, %v247
  %v342 = vpack.c.b16 %v252, %v250
  %v343 = vpack.c.b16 %v253, %v251
  %v344 = vpack.c.b16 %v256, %v254
  %v345 = vpack.c.b16 %v257, %v255
  %v346 = vpack.c.b16 %v260, %v258
  %v347 = vpack.c.b16 %v261, %v259
  %v348 = vpack.c.b16 %v264, %v262
  %v349 = vpack.c.b16 %v265, %v263
  %v350 = vpack.c.b16 %v268, %v266
  %v351 = vpack.c.b16 %v269, %v267
  %v352 = vpack.c.b16 %v272, %v270
  %v353 = vpack.c.b16 %v273, %v271
  %v354 = vpack.c.b16 %v276, %v274
  %v355 = vpack.c.b16 %v277, %v275
  %v356 = vpack.c.b16 %v280, %v278
  %v357 = vpack.c.b16 %v281, %v279
  %v358 = vpack.c.b16 %v284, %v282
  %v359 = vpack.c.b16 %v285, %v283
  %v360 = vpack.c.b16 %v288, %v286
  %v361 = vpack.c.b16 %v289, %v287
  %v362 = vpack.c.b16 %v292, %v290
  %v363 = vpack.c.b16 %v293, %v291
  %v364 = vpack.c.b16 %v296, %v294
  %v365 = vpack.c.b16 %v297, %v295
  %v366 = vpack.c.b16 %v300, %v298
  %v367 = vpack.c.b16 %v301, %v299
  %v368 = vpack.c.b16 %v304, %v302
  %v369 = vpack.c.b16 %v305, %v303
  %v466 = vunpack.c.l.b16 %v82
  %v467 = vunpack.c.l.b16 %v83
  %v468 = vunpack.c.l.b16 %v84
  %v469 = vunpack.c.l.b16 %v85
  %v470 = vunpack.c.l.b16 %v86
  %v471 = vunpack.c.l.b16 %v87
  %v472 = vunpack.c.l.b16 %v88
  %v473 = vunpack.c.l.b16 %v89
  %v474 = vunpack.c.l.b16 %v90
  %v475 = vunpack.c.l.b16 %v91
  %v476 = vunpack.c.l.b16 %v92
  %v477 = vunpack.c.l.b16 %v93
  %v478 = vunpack.c.l.b16 %v94
  %v479 = vunpack.c.l.b16 %v95
  %v480 = vunpack.c.l.b16 %v96
  %v481 = vunpack.c.l.b16 %v97
  %v482 = vunpack.c.l.b16 %v98
  %v483 = vunpack.c.l.b16 %v99
  %v484 = vunpack.c.l.b16 %v100
  %v485 = vunpack.c.l.b16 %v101
  %v486 = vunpack.c.l.b16 %v102
  %v487 = vunpack.c.l.b16 %v103
  %v488 = vunpack.c.l.b16 %v104
  %v489 = vunpack.c.l.b16 %v105
  %v490 = vunpack.c.l.b16 %v106
  %v491 = vunpack.c.l.b16 %v107
  %v492 = vunpack.c.l.b16 %v108
  %v493 = vunpack.c.l.b16 %v109
  %v494 = vunpack.c.l.b16 %v110
  %v495 = vunpack.c.l.b16 %v111
  %v496 = vunpack.c.l.b16 %v112
  %v497 = vunpack.c.l.b16 %v113
  %v498 = vpack.c.b16 %v467, %v466
  %v499 = vpack.c.b16 %v469, %v468
  %v500 = vpack.c.b16 %v471, %v470
  %v501 = vpack.c.b16 %v473, %v472
  %v502 = vpack.c.b16 %v475, %v474
  %v503 = vpack.c.b16 %v477, %v476
  %v504 = vpack.c.b16 %v479, %v478
  %v505 = vpack.c.b16 %v481, %v480
  %v506 = vpack.c.b16 %v483, %v482
  %v507 = vpack.c.b16 %v485, %v484
  %v508 = vpack.c.b16 %v487, %v486
  %v509 = vpack.c.b16 %v489, %v488
  %v510 = vpack.c.b16 %v491, %v490
  %v511 = vpack.c.b16 %v493, %v492
  %v512 = vpack.c.b16 %v495, %v494
  %v513 = vpack.c.b16 %v497, %v496
  %530 = vmatprep.subr.bf16.mxu0 0
  %531 = vmatpush1.bf16.msra.mxu0 %v505
  %532 = vmatprep.subr.bf16.mxu0 0
  %533 = vmatpush1.bf16.msra.mxu0 %v504
  %534 = vmatprep.subr.bf16.mxu0 0
  %535 = vmatpush1.bf16.msra.mxu0 %v503
  %536 = vmatprep.subr.bf16.mxu0 0
  %537 = vmatpush1.bf16.msra.mxu0 %v502
  %538 = vmatprep.subr.bf16.mxu0 0
  %539 = vmatpush1.bf16.msra.mxu0 %v501
  %540 = vmatprep.subr.bf16.mxu0 0
  %541 = vmatpush1.bf16.msra.mxu0 %v500
  %542 = vmatprep.subr.bf16.mxu0 0
  %543 = vmatpush1.bf16.msra.mxu0 %v499
  %544 = vmatprep.subr.bf16.mxu0 0
  %545 = vmatpush1.bf16.msra.mxu0 %v498
  %546 = vmatprep.subr.bf16.mxu0 0
  %547 = vmatpush2.bf16.msra.mxu0 %v513
  %548 = vmatprep.subr.bf16.mxu0 0
  %549 = vmatpush2.bf16.msra.mxu0 %v512
  %550 = vmatprep.subr.bf16.mxu0 0
  %551 = vmatpush2.bf16.msra.mxu0 %v511
  %552 = vmatprep.subr.bf16.mxu0 0
  %553 = vmatpush2.bf16.msra.mxu0 %v510
  %554 = vmatprep.subr.bf16.mxu0 0
  %555 = vmatpush2.bf16.msra.mxu0 %v509
  %556 = vmatprep.subr.bf16.mxu0 0
  %557 = vmatpush2.bf16.msra.mxu0 %v508
  %558 = vmatprep.subr.bf16.mxu0 0
  %559 = vmatpush2.bf16.msra.mxu0 %v507
  %560 = vmatprep.subr.bf16.mxu0 0
  %561 = vmatpush2.bf16.msra.mxu0 %v506
  %562 = vmatprep.mubr.bf16.mxu0 %v307
  %563 = vmatmul.mubr.bf16.gmra.mxu0 %v306
  %v564 = vpop.f32.mrf.mxu0
  %v565 = vadd.f32 0.0, %v564
  %v566 = vpop.f32.mrf.mxu0
  %v567 = vpop.f32.mrf.mxu0
  %v568 = vadd.f32 0.0, %v567
  %v569 = vpop.f32.mrf.mxu0
  %570 = vmatprep.mubr.bf16.mxu0 %v309
  %571 = vmatmul.mubr.bf16.gmra.mxu0 %v308
  %v572 = vpop.f32.mrf.mxu0
  %v573 = vadd.f32 0.0, %v572
  %v574 = vpop.f32.mrf.mxu0
  %v575 = vpop.f32.mrf.mxu0
  %v576 = vadd.f32 0.0, %v575
  %v577 = vpop.f32.mrf.mxu0
  %578 = vmatprep.mubr.bf16.mxu0 %v311
  %579 = vmatmul.mubr.bf16.gmra.mxu0 %v310
  %v580 = vpop.f32.mrf.mxu0
  %v581 = vadd.f32 0.0, %v580
  %v582 = vpop.f32.mrf.mxu0
  %v583 = vpop.f32.mrf.mxu0
  %v584 = vadd.f32 0.0, %v583
  %v585 = vpop.f32.mrf.mxu0
  %586 = vmatprep.mubr.bf16.mxu0 %v313
  %587 = vmatmul.mubr.bf16.gmra.mxu0 %v312
  %v588 = vpop.f32.mrf.mxu0
  %v589 = vadd.f32 0.0, %v588
  %v590 = vpop.f32.mrf.mxu0
  %v591 = vpop.f32.mrf.mxu0
  %v592 = vadd.f32 0.0, %v591
  %v593 = vpop.f32.mrf.mxu0
  %594 = vmatprep.mubr.bf16.mxu0 %v315
  %595 = vmatmul.mubr.bf16.gmra.mxu0 %v314
  %v596 = vpop.f32.mrf.mxu0
  %v597 = vadd.f32 0.0, %v596
  %v598 = vpop.f32.mrf.mxu0
  %v599 = vpop.f32.mrf.mxu0
  %v600 = vadd.f32 0.0, %v599
  %v601 = vpop.f32.mrf.mxu0
  %602 = vmatprep.mubr.bf16.mxu0 %v317
  %603 = vmatmul.mubr.bf16.gmra.mxu0 %v316
  %v604 = vpop.f32.mrf.mxu0
  %v605 = vadd.f32 0.0, %v604
  %v606 = vpop.f32.mrf.mxu0
  %v607 = vpop.f32.mrf.mxu0
  %v608 = vadd.f32 0.0, %v607
  %v609 = vpop.f32.mrf.mxu0
  %610 = vmatprep.mubr.bf16.mxu0 %v319
  %611 = vmatmul.mubr.bf16.gmra.mxu0 %v318
  %v612 = vpop.f32.mrf.mxu0
  %v613 = vadd.f32 0.0, %v612
  %v614 = vpop.f32.mrf.mxu0
  %v615 = vpop.f32.mrf.mxu0
  %v616 = vadd.f32 0.0, %v615
  %v617 = vpop.f32.mrf.mxu0
  %618 = vmatprep.mubr.bf16.mxu0 %v321
  %619 = vmatmul.mubr.bf16.gmra.mxu0 %v320
  %v620 = vpop.f32.mrf.mxu0
  %v621 = vadd.f32 0.0, %v620
  %v622 = vpop.f32.mrf.mxu0
  %v623 = vpop.f32.mrf.mxu0
  %v624 = vadd.f32 0.0, %v623
  %v625 = vpop.f32.mrf.mxu0
  %626 = vmatprep.mubr.bf16.mxu0 %v323
  %627 = vmatmul.mubr.bf16.gmra.mxu0 %v322
  %v628 = vpop.f32.mrf.mxu0
  %v629 = vadd.f32 0.0, %v628
  %v630 = vpop.f32.mrf.mxu0
  %v631 = vpop.f32.mrf.mxu0
  %v632 = vadd.f32 0.0, %v631
  %v633 = vpop.f32.mrf.mxu0
  %634 = vmatprep.mubr.bf16.mxu0 %v325
  %635 = vmatmul.mubr.bf16.gmra.mxu0 %v324
  %v636 = vpop.f32.mrf.mxu0
  %v637 = vadd.f32 0.0, %v636
  %v638 = vpop.f32.mrf.mxu0
  %v639 = vpop.f32.mrf.mxu0
  %v640 = vadd.f32 0.0, %v639
  %v641 = vpop.f32.mrf.mxu0
  %642 = vmatprep.mubr.bf16.mxu0 %v327
  %643 = vmatmul.mubr.bf16.gmra.mxu0 %v326
  %v644 = vpop.f32.mrf.mxu0
  %v645 = vadd.f32 0.0, %v644
  %v646 = vpop.f32.mrf.mxu0
  %v647 = vpop.f32.mrf.mxu0
  %v648 = vadd.f32 0.0, %v647
  %v649 = vpop.f32.mrf.mxu0
  %650 = vmatprep.mubr.bf16.mxu0 %v329
  %651 = vmatmul.mubr.bf16.gmra.mxu0 %v328
  %v652 = vpop.f32.mrf.mxu0
  %v653 = vadd.f32 0.0, %v652
  %v654 = vpop.f32.mrf.mxu0
  %v655 = vpop.f32.mrf.mxu0
  %v656 = vadd.f32 0.0, %v655
  %v657 = vpop.f32.mrf.mxu0
  %658 = vmatprep.mubr.bf16.mxu0 %v331
  %659 = vmatmul.mubr.bf16.gmra.mxu0 %v330
  %v660 = vpop.f32.mrf.mxu0
  %v661 = vadd.f32 0.0, %v660
  %v662 = vpop.f32.mrf.mxu0
  %v663 = vpop.f32.mrf.mxu0
  %v664 = vadd.f32 0.0, %v663
  %v665 = vpop.f32.mrf.mxu0
  %666 = vmatprep.mubr.bf16.mxu0 %v333
  %667 = vmatmul.mubr.bf16.gmra.mxu0 %v332
  %v668 = vpop.f32.mrf.mxu0
  %v669 = vadd.f32 0.0, %v668
  %v670 = vpop.f32.mrf.mxu0
  %v671 = vpop.f32.mrf.mxu0
  %v672 = vadd.f32 0.0, %v671
  %v673 = vpop.f32.mrf.mxu0
  %674 = vmatprep.mubr.bf16.mxu0 %v335
  %675 = vmatmul.mubr.bf16.gmra.mxu0 %v334
  %v676 = vpop.f32.mrf.mxu0
  %v677 = vadd.f32 0.0, %v676
  %v678 = vpop.f32.mrf.mxu0
  %v679 = vpop.f32.mrf.mxu0
  %v680 = vadd.f32 0.0, %v679
  %v681 = vpop.f32.mrf.mxu0
  %682 = vmatprep.mubr.bf16.mxu0 %v337
  %683 = vmatmul.mubr.bf16.gmra.mxu0 %v336
  %v684 = vpop.f32.mrf.mxu0
  %v685 = vadd.f32 0.0, %v684
  %v686 = vpop.f32.mrf.mxu0
  %v687 = vpop.f32.mrf.mxu0
  %v688 = vadd.f32 0.0, %v687
  %v689 = vpop.f32.mrf.mxu0
  %690 = vmatprep.mubr.bf16.mxu0 %v339
  %691 = vmatmul.mubr.bf16.gmra.mxu0 %v338
  %v692 = vpop.f32.mrf.mxu0
  %v693 = vadd.f32 0.0, %v692
  %v694 = vpop.f32.mrf.mxu0
  %v695 = vpop.f32.mrf.mxu0
  %v696 = vadd.f32 0.0, %v695
  %v697 = vpop.f32.mrf.mxu0
  %698 = vmatprep.mubr.bf16.mxu0 %v341
  %699 = vmatmul.mubr.bf16.gmra.mxu0 %v340
  %v700 = vpop.f32.mrf.mxu0
  %v701 = vadd.f32 0.0, %v700
  %v702 = vpop.f32.mrf.mxu0
  %v703 = vpop.f32.mrf.mxu0
  %v704 = vadd.f32 0.0, %v703
  %v705 = vpop.f32.mrf.mxu0
  %706 = vmatprep.mubr.bf16.mxu0 %v343
  %707 = vmatmul.mubr.bf16.gmra.mxu0 %v342
  %v708 = vpop.f32.mrf.mxu0
  %v709 = vadd.f32 0.0, %v708
  %v710 = vpop.f32.mrf.mxu0
  %v711 = vpop.f32.mrf.mxu0
  %v712 = vadd.f32 0.0, %v711
  %v713 = vpop.f32.mrf.mxu0
  %714 = vmatprep.mubr.bf16.mxu0 %v345
  %715 = vmatmul.mubr.bf16.gmra.mxu0 %v344
  %v716 = vpop.f32.mrf.mxu0
  %v717 = vadd.f32 0.0, %v716
  %v718 = vpop.f32.mrf.mxu0
  %v719 = vpop.f32.mrf.mxu0
  %v720 = vadd.f32 0.0, %v719
  %v721 = vpop.f32.mrf.mxu0
  %722 = vmatprep.mubr.bf16.mxu0 %v347
  %723 = vmatmul.mubr.bf16.gmra.mxu0 %v346
  %v724 = vpop.f32.mrf.mxu0
  %v725 = vadd.f32 0.0, %v724
  %v726 = vpop.f32.mrf.mxu0
  %v727 = vpop.f32.mrf.mxu0
  %v728 = vadd.f32 0.0, %v727
  %v729 = vpop.f32.mrf.mxu0
  %730 = vmatprep.mubr.bf16.mxu0 %v349
  %731 = vmatmul.mubr.bf16.gmra.mxu0 %v348
  %v732 = vpop.f32.mrf.mxu0
  %v733 = vadd.f32 0.0, %v732
  %v734 = vpop.f32.mrf.mxu0
  %v735 = vpop.f32.mrf.mxu0
  %v736 = vadd.f32 0.0, %v735
  %v737 = vpop.f32.mrf.mxu0
  %738 = vmatprep.mubr.bf16.mxu0 %v351
  %739 = vmatmul.mubr.bf16.gmra.mxu0 %v350
  %v740 = vpop.f32.mrf.mxu0
  %v741 = vadd.f32 0.0, %v740
  %v742 = vpop.f32.mrf.mxu0
  %v743 = vpop.f32.mrf.mxu0
  %v744 = vadd.f32 0.0, %v743
  %v745 = vpop.f32.mrf.mxu0
  %746 = vmatprep.mubr.bf16.mxu0 %v353
  %747 = vmatmul.mubr.bf16.gmra.mxu0 %v352
  %v748 = vpop.f32.mrf.mxu0
  %v749 = vadd.f32 0.0, %v748
  %v750 = vpop.f32.mrf.mxu0
  %v751 = vpop.f32.mrf.mxu0
  %v752 = vadd.f32 0.0, %v751
  %v753 = vpop.f32.mrf.mxu0
  %754 = vmatprep.mubr.bf16.mxu0 %v355
  %755 = vmatmul.mubr.bf16.gmra.mxu0 %v354
  %v756 = vpop.f32.mrf.mxu0
  %v757 = vadd.f32 0.0, %v756
  %v758 = vpop.f32.mrf.mxu0
  %v759 = vpop.f32.mrf.mxu0
  %v760 = vadd.f32 0.0, %v759
  %v761 = vpop.f32.mrf.mxu0
  %762 = vmatprep.mubr.bf16.mxu0 %v357
  %763 = vmatmul.mubr.bf16.gmra.mxu0 %v356
  %v764 = vpop.f32.mrf.mxu0
  %v765 = vadd.f32 0.0, %v764
  %v766 = vpop.f32.mrf.mxu0
  %v767 = vpop.f32.mrf.mxu0
  %v768 = vadd.f32 0.0, %v767
  %v769 = vpop.f32.mrf.mxu0
  %770 = vmatprep.mubr.bf16.mxu0 %v359
  %771 = vmatmul.mubr.bf16.gmra.mxu0 %v358
  %v772 = vpop.f32.mrf.mxu0
  %v773 = vadd.f32 0.0, %v772
  %v774 = vpop.f32.mrf.mxu0
  %v775 = vpop.f32.mrf.mxu0
  %v776 = vadd.f32 0.0, %v775
  %v777 = vpop.f32.mrf.mxu0
  %778 = vmatprep.mubr.bf16.mxu0 %v361
  %779 = vmatmul.mubr.bf16.gmra.mxu0 %v360
  %v780 = vpop.f32.mrf.mxu0
  %v781 = vadd.f32 0.0, %v780
  %v782 = vpop.f32.mrf.mxu0
  %v783 = vpop.f32.mrf.mxu0
  %v784 = vadd.f32 0.0, %v783
  %v785 = vpop.f32.mrf.mxu0
  %786 = vmatprep.mubr.bf16.mxu0 %v363
  %787 = vmatmul.mubr.bf16.gmra.mxu0 %v362
  %v788 = vpop.f32.mrf.mxu0
  %v789 = vadd.f32 0.0, %v788
  %v790 = vpop.f32.mrf.mxu0
  %v791 = vpop.f32.mrf.mxu0
  %v792 = vadd.f32 0.0, %v791
  %v793 = vpop.f32.mrf.mxu0
  %794 = vmatprep.mubr.bf16.mxu0 %v365
  %795 = vmatmul.mubr.bf16.gmra.mxu0 %v364
  %v796 = vpop.f32.mrf.mxu0
  %v797 = vadd.f32 0.0, %v796
  %v798 = vpop.f32.mrf.mxu0
  %v799 = vpop.f32.mrf.mxu0
  %v800 = vadd.f32 0.0, %v799
  %v801 = vpop.f32.mrf.mxu0
  %802 = vmatprep.mubr.bf16.mxu0 %v367
  %803 = vmatmul.mubr.bf16.gmra.mxu0 %v366
  %v804 = vpop.f32.mrf.mxu0
  %v805 = vadd.f32 0.0, %v804
  %v806 = vpop.f32.mrf.mxu0
  %v807 = vpop.f32.mrf.mxu0
  %v808 = vadd.f32 0.0, %v807
  %v809 = vpop.f32.mrf.mxu0
  %810 = vmatprep.mubr.bf16.mxu0 %v369
  %811 = vmatmul.mubr.bf16.gmra.mxu0 %v368
  %v812 = vpop.f32.mrf.mxu0
  %v813 = vadd.f32 0.0, %v812
  %v814 = vpop.f32.mrf.mxu0
  %v815 = vpop.f32.mrf.mxu0
  %v816 = vadd.f32 0.0, %v815
  %v817 = vpop.f32.mrf.mxu0
  %818 = vdwg.mxu0
  %v819 = vld [vmem:[%s2] sm:$0x1]
  %v821 = vlaneseq
  %v822 = vshrl.u32 %v821, 7
  %v823 = vsub.s32 0, %v822
  %v824 = vrot.slane %v819, %v823
  %v826 = vmul.f32 %v565, %v824
  %v827 = vmul.f32 %v568, %v824
  %v828 = vmul.f32 %v573, %v824
  %v829 = vmul.f32 %v576, %v824
  %v830 = vmul.f32 %v581, %v824
  %v831 = vmul.f32 %v584, %v824
  %v832 = vmul.f32 %v589, %v824
  %v833 = vmul.f32 %v592, %v824
  %v834 = vmul.f32 %v597, %v824
  %v835 = vmul.f32 %v600, %v824
  %v836 = vmul.f32 %v605, %v824
  %v837 = vmul.f32 %v608, %v824
  %v838 = vmul.f32 %v613, %v824
  %v839 = vmul.f32 %v616, %v824
  %v840 = vmul.f32 %v621, %v824
  %v841 = vmul.f32 %v624, %v824
  %v842 = vmul.f32 %v629, %v824
  %v843 = vmul.f32 %v632, %v824
  %v844 = vmul.f32 %v637, %v824
  %v845 = vmul.f32 %v640, %v824
  %v846 = vmul.f32 %v645, %v824
  %v847 = vmul.f32 %v648, %v824
  %v848 = vmul.f32 %v653, %v824
  %v849 = vmul.f32 %v656, %v824
  %v850 = vmul.f32 %v661, %v824
  %v851 = vmul.f32 %v664, %v824
  %v852 = vmul.f32 %v669, %v824
  %v853 = vmul.f32 %v672, %v824
  %v854 = vmul.f32 %v677, %v824
  %v855 = vmul.f32 %v680, %v824
  %v856 = vmul.f32 %v685, %v824
  %v857 = vmul.f32 %v688, %v824
  %v858 = vmul.f32 %v693, %v824
  %v859 = vmul.f32 %v696, %v824
  %v860 = vmul.f32 %v701, %v824
  %v861 = vmul.f32 %v704, %v824
  %v862 = vmul.f32 %v709, %v824
  %v863 = vmul.f32 %v712, %v824
  %v864 = vmul.f32 %v717, %v824
  %v865 = vmul.f32 %v720, %v824
  %v866 = vmul.f32 %v725, %v824
  %v867 = vmul.f32 %v728, %v824
  %v868 = vmul.f32 %v733, %v824
  %v869 = vmul.f32 %v736, %v824
  %v870 = vmul.f32 %v741, %v824
  %v871 = vmul.f32 %v744, %v824
  %v872 = vmul.f32 %v749, %v824
  %v873 = vmul.f32 %v752, %v824
  %v874 = vmul.f32 %v757, %v824
  %v875 = vmul.f32 %v760, %v824
  %v876 = vmul.f32 %v765, %v824
  %v877 = vmul.f32 %v768, %v824
  %v878 = vmul.f32 %v773, %v824
  %v879 = vmul.f32 %v776, %v824
  %v880 = vmul.f32 %v781, %v824
  %v881 = vmul.f32 %v784, %v824
  %v882 = vmul.f32 %v789, %v824
  %v883 = vmul.f32 %v792, %v824
  %v884 = vmul.f32 %v797, %v824
  %v885 = vmul.f32 %v800, %v824
  %v886 = vmul.f32 %v805, %v824
  %v887 = vmul.f32 %v808, %v824
  %v888 = vmul.f32 %v813, %v824
  %v889 = vmul.f32 %v816, %v824
  %v890 = vld [vmem:[%s3] sm:$0x1]
  %v892 = vlaneseq
  %v893 = vshrl.u32 %v892, 7
  %v894 = vsub.s32 0, %v893
  %v895 = vrot.slane %v890, %v894
  %v897 = vadd.f32 %v826, %v895
  %v898 = vadd.f32 %v827, %v895
  %v899 = vadd.f32 %v828, %v895
  %v900 = vadd.f32 %v829, %v895
  %v901 = vadd.f32 %v830, %v895
  %v902 = vadd.f32 %v831, %v895
  %v903 = vadd.f32 %v832, %v895
  %v904 = vadd.f32 %v833, %v895
  %v905 = vadd.f32 %v834, %v895
  %v906 = vadd.f32 %v835, %v895
  %v907 = vadd.f32 %v836, %v895
  %v908 = vadd.f32 %v837, %v895
  %v909 = vadd.f32 %v838, %v895
  %v910 = vadd.f32 %v839, %v895
  %v911 = vadd.f32 %v840, %v895
  %v912 = vadd.f32 %v841, %v895
  %v913 = vadd.f32 %v842, %v895
  %v914 = vadd.f32 %v843, %v895
  %v915 = vadd.f32 %v844, %v895
  %v916 = vadd.f32 %v845, %v895
  %v917 = vadd.f32 %v846, %v895
  %v918 = vadd.f32 %v847, %v895
  %v919 = vadd.f32 %v848, %v895
  %v920 = vadd.f32 %v849, %v895
  %v921 = vadd.f32 %v850, %v895
  %v922 = vadd.f32 %v851, %v895
  %v923 = vadd.f32 %v852, %v895
  %v924 = vadd.f32 %v853, %v895
  %v925 = vadd.f32 %v854, %v895
  %v926 = vadd.f32 %v855, %v895
  %v927 = vadd.f32 %v856, %v895
  %v928 = vadd.f32 %v857, %v895
  %v929 = vadd.f32 %v858, %v895
  %v930 = vadd.f32 %v859, %v895
  %v931 = vadd.f32 %v860, %v895
  %v932 = vadd.f32 %v861, %v895
  %v933 = vadd.f32 %v862, %v895
  %v934 = vadd.f32 %v863, %v895
  %v935 = vadd.f32 %v864, %v895
  %v936 = vadd.f32 %v865, %v895
  %v937 = vadd.f32 %v866, %v895
  %v938 = vadd.f32 %v867, %v895
  %v939 = vadd.f32 %v868, %v895
  %v940 = vadd.f32 %v869, %v895
  %v941 = vadd.f32 %v870, %v895
  %v942 = vadd.f32 %v871, %v895
  %v943 = vadd.f32 %v872, %v895
  %v944 = vadd.f32 %v873, %v895
  %v945 = vadd.f32 %v874, %v895
  %v946 = vadd.f32 %v875, %v895
  %v947 = vadd.f32 %v876, %v895
  %v948 = vadd.f32 %v877, %v895
  %v949 = vadd.f32 %v878, %v895
  %v950 = vadd.f32 %v879, %v895
  %v951 = vadd.f32 %v880, %v895
  %v952 = vadd.f32 %v881, %v895
  %v953 = vadd.f32 %v882, %v895
  %v954 = vadd.f32 %v883, %v895
  %v955 = vadd.f32 %v884, %v895
  %v956 = vadd.f32 %v885, %v895
  %v957 = vadd.f32 %v886, %v895
  %v958 = vadd.f32 %v887, %v895
  %v959 = vadd.f32 %v888, %v895
  %v960 = vadd.f32 %v889, %v895
  %v961 = vmax.f32 %v897, 0.0
  %v962 = vmax.f32 %v898, 0.0
  %v963 = vmax.f32 %v899, 0.0
  %v964 = vmax.f32 %v900, 0.0
  %v965 = vmax.f32 %v901, 0.0
  %v966 = vmax.f32 %v902, 0.0
  %v967 = vmax.f32 %v903, 0.0
  %v968 = vmax.f32 %v904, 0.0
  %v969 = vmax.f32 %v905, 0.0
  %v970 = vmax.f32 %v906, 0.0
  %v971 = vmax.f32 %v907, 0.0
  %v972 = vmax.f32 %v908, 0.0
  %v973 = vmax.f32 %v909, 0.0
  %v974 = vmax.f32 %v910, 0.0
  %v975 = vmax.f32 %v911, 0.0
  %v976 = vmax.f32 %v912, 0.0
  %v977 = vmax.f32 %v913, 0.0
  %v978 = vmax.f32 %v914, 0.0
  %v979 = vmax.f32 %v915, 0.0
  %v980 = vmax.f32 %v916, 0.0
  %v981 = vmax.f32 %v917, 0.0
  %v982 = vmax.f32 %v918, 0.0
  %v983 = vmax.f32 %v919, 0.0
  %v984 = vmax.f32 %v920, 0.0
  %v985 = vmax.f32 %v921, 0.0
  %v986 = vmax.f32 %v922, 0.0
  %v987 = vmax.f32 %v923, 0.0
  %v988 = vmax.f32 %v924, 0.0
  %v989 = vmax.f32 %v925, 0.0
  %v990 = vmax.f32 %v926, 0.0
  %v991 = vmax.f32 %v927, 0.0
  %v992 = vmax.f32 %v928, 0.0
  %v993 = vmax.f32 %v929, 0.0
  %v994 = vmax.f32 %v930, 0.0
  %v995 = vmax.f32 %v931, 0.0
  %v996 = vmax.f32 %v932, 0.0
  %v997 = vmax.f32 %v933, 0.0
  %v998 = vmax.f32 %v934, 0.0
  %v999 = vmax.f32 %v935, 0.0
  %v1000 = vmax.f32 %v936, 0.0
  %v1001 = vmax.f32 %v937, 0.0
  %v1002 = vmax.f32 %v938, 0.0
  %v1003 = vmax.f32 %v939, 0.0
  %v1004 = vmax.f32 %v940, 0.0
  %v1005 = vmax.f32 %v941, 0.0
  %v1006 = vmax.f32 %v942, 0.0
  %v1007 = vmax.f32 %v943, 0.0
  %v1008 = vmax.f32 %v944, 0.0
  %v1009 = vmax.f32 %v945, 0.0
  %v1010 = vmax.f32 %v946, 0.0
  %v1011 = vmax.f32 %v947, 0.0
  %v1012 = vmax.f32 %v948, 0.0
  %v1013 = vmax.f32 %v949, 0.0
  %v1014 = vmax.f32 %v950, 0.0
  %v1015 = vmax.f32 %v951, 0.0
  %v1016 = vmax.f32 %v952, 0.0
  %v1017 = vmax.f32 %v953, 0.0
  %v1018 = vmax.f32 %v954, 0.0
  %v1019 = vmax.f32 %v955, 0.0
  %v1020 = vmax.f32 %v956, 0.0
  %v1021 = vmax.f32 %v957, 0.0
  %v1022 = vmax.f32 %v958, 0.0
  %v1023 = vmax.f32 %v959, 0.0
  %v1024 = vmax.f32 %v960, 0.0
  %v1025 = vpack.c.bf16 %v962, %v961
  %v1026 = vpack.c.bf16 %v964, %v963
  %v1027 = vpack.c.bf16 %v966, %v965
  %v1028 = vpack.c.bf16 %v968, %v967
  %v1029 = vpack.c.bf16 %v970, %v969
  %v1030 = vpack.c.bf16 %v972, %v971
  %v1031 = vpack.c.bf16 %v974, %v973
  %v1032 = vpack.c.bf16 %v976, %v975
  %v1033 = vpack.c.bf16 %v978, %v977
  %v1034 = vpack.c.bf16 %v980, %v979
  %v1035 = vpack.c.bf16 %v982, %v981
  %v1036 = vpack.c.bf16 %v984, %v983
  %v1037 = vpack.c.bf16 %v986, %v985
  %v1038 = vpack.c.bf16 %v988, %v987
  %v1039 = vpack.c.bf16 %v990, %v989
  %v1040 = vpack.c.bf16 %v992, %v991
  %v1041 = vpack.c.bf16 %v994, %v993
  %v1042 = vpack.c.bf16 %v996, %v995
  %v1043 = vpack.c.bf16 %v998, %v997
  %v1044 = vpack.c.bf16 %v1000, %v999
  %v1045 = vpack.c.bf16 %v1002, %v1001
  %v1046 = vpack.c.bf16 %v1004, %v1003
  %v1047 = vpack.c.bf16 %v1006, %v1005
  %v1048 = vpack.c.bf16 %v1008, %v1007
  %v1049 = vpack.c.bf16 %v1010, %v1009
  %v1050 = vpack.c.bf16 %v1012, %v1011
  %v1051 = vpack.c.bf16 %v1014, %v1013
  %v1052 = vpack.c.bf16 %v1016, %v1015
  %v1053 = vpack.c.bf16 %v1018, %v1017
  %v1054 = vpack.c.bf16 %v1020, %v1019
  %v1055 = vpack.c.bf16 %v1022, %v1021
  %v1056 = vpack.c.bf16 %v1024, %v1023
  %v1089 = vunpack.c.l.b16 %v1025
  %v1090 = vunpack.c.h.b16 %v1025
  %v1091 = vunpack.c.l.b16 %v1026
  %v1092 = vunpack.c.h.b16 %v1026
  %v1093 = vunpack.c.l.b16 %v1027
  %v1094 = vunpack.c.h.b16 %v1027
  %v1095 = vunpack.c.l.b16 %v1028
  %v1096 = vunpack.c.h.b16 %v1028
  %v1097 = vunpack.c.l.b16 %v1029
  %v1098 = vunpack.c.h.b16 %v1029
  %v1099 = vunpack.c.l.b16 %v1030
  %v1100 = vunpack.c.h.b16 %v1030
  %v1101 = vunpack.c.l.b16 %v1031
  %v1102 = vunpack.c.h.b16 %v1031
  %v1103 = vunpack.c.l.b16 %v1032
  %v1104 = vunpack.c.h.b16 %v1032
  %v1105 = vunpack.c.l.b16 %v1033
  %v1106 = vunpack.c.h.b16 %v1033
  %v1107 = vunpack.c.l.b16 %v1034
  %v1108 = vunpack.c.h.b16 %v1034
  %v1109 = vunpack.c.l.b16 %v1035
  %v1110 = vunpack.c.h.b16 %v1035
  %v1111 = vunpack.c.l.b16 %v1036
  %v1112 = vunpack.c.h.b16 %v1036
  %v1113 = vunpack.c.l.b16 %v1037
  %v1114 = vunpack.c.h.b16 %v1037
  %v1115 = vunpack.c.l.b16 %v1038
  %v1116 = vunpack.c.h.b16 %v1038
  %v1117 = vunpack.c.l.b16 %v1039
  %v1118 = vunpack.c.h.b16 %v1039
  %v1119 = vunpack.c.l.b16 %v1040
  %v1120 = vunpack.c.h.b16 %v1040
  %v1121 = vunpack.c.l.b16 %v1041
  %v1122 = vunpack.c.h.b16 %v1041
  %v1123 = vunpack.c.l.b16 %v1042
  %v1124 = vunpack.c.h.b16 %v1042
  %v1125 = vunpack.c.l.b16 %v1043
  %v1126 = vunpack.c.h.b16 %v1043
  %v1127 = vunpack.c.l.b16 %v1044
  %v1128 = vunpack.c.h.b16 %v1044
  %v1129 = vunpack.c.l.b16 %v1045
  %v1130 = vunpack.c.h.b16 %v1045
  %v1131 = vunpack.c.l.b16 %v1046
  %v1132 = vunpack.c.h.b16 %v1046
  %v1133 = vunpack.c.l.b16 %v1047
  %v1134 = vunpack.c.h.b16 %v1047
  %v1135 = vunpack.c.l.b16 %v1048
  %v1136 = vunpack.c.h.b16 %v1048
  %v1137 = vunpack.c.l.b16 %v1049
  %v1138 = vunpack.c.h.b16 %v1049
  %v1139 = vunpack.c.l.b16 %v1050
  %v1140 = vunpack.c.h.b16 %v1050
  %v1141 = vunpack.c.l.b16 %v1051
  %v1142 = vunpack.c.h.b16 %v1051
  %v1143 = vunpack.c.l.b16 %v1052
  %v1144 = vunpack.c.h.b16 %v1052
  %v1145 = vunpack.c.l.b16 %v1053
  %v1146 = vunpack.c.h.b16 %v1053
  %v1147 = vunpack.c.l.b16 %v1054
  %v1148 = vunpack.c.h.b16 %v1054
  %v1149 = vunpack.c.l.b16 %v1055
  %v1150 = vunpack.c.h.b16 %v1055
  %v1151 = vunpack.c.l.b16 %v1056
  %v1152 = vunpack.c.h.b16 %v1056
  %v1153 = vpack.c.b16 %v1089, %v1089
  %v1154 = vpack.c.b16 %v1090, %v1090
  %v1155 = vpack.c.b16 %v1091, %v1091
  %v1156 = vpack.c.b16 %v1092, %v1092
  %v1157 = vpack.c.b16 %v1093, %v1093
  %v1158 = vpack.c.b16 %v1094, %v1094
  %v1159 = vpack.c.b16 %v1095, %v1095
  %v1160 = vpack.c.b16 %v1096, %v1096
  %v1161 = vpack.c.b16 %v1097, %v1097
  %v1162 = vpack.c.b16 %v1098, %v1098
  %v1163 = vpack.c.b16 %v1099, %v1099
  %v1164 = vpack.c.b16 %v1100, %v1100
  %v1165 = vpack.c.b16 %v1101, %v1101
  %v1166 = vpack.c.b16 %v1102, %v1102
  %v1167 = vpack.c.b16 %v1103, %v1103
  %v1168 = vpack.c.b16 %v1104, %v1104
  %v1169 = vpack.c.b16 %v1105, %v1105
  %v1170 = vpack.c.b16 %v1106, %v1106
  %v1171 = vpack.c.b16 %v1107, %v1107
  %v1172 = vpack.c.b16 %v1108, %v1108
  %v1173 = vpack.c.b16 %v1109, %v1109
  %v1174 = vpack.c.b16 %v1110, %v1110
  %v1175 = vpack.c.b16 %v1111, %v1111
  %v1176 = vpack.c.b16 %v1112, %v1112
  %v1177 = vpack.c.b16 %v1113, %v1113
  %v1178 = vpack.c.b16 %v1114, %v1114
  %v1179 = vpack.c.b16 %v1115, %v1115
  %v1180 = vpack.c.b16 %v1116, %v1116
  %v1181 = vpack.c.b16 %v1117, %v1117
  %v1182 = vpack.c.b16 %v1118, %v1118
  %v1183 = vpack.c.b16 %v1119, %v1119
  %v1184 = vpack.c.b16 %v1120, %v1120
  %v1185 = vpack.c.b16 %v1121, %v1121
  %v1186 = vpack.c.b16 %v1122, %v1122
  %v1187 = vpack.c.b16 %v1123, %v1123
  %v1188 = vpack.c.b16 %v1124, %v1124
  %v1189 = vpack.c.b16 %v1125, %v1125
  %v1190 = vpack.c.b16 %v1126, %v1126
  %v1191 = vpack.c.b16 %v1127, %v1127
  %v1192 = vpack.c.b16 %v1128, %v1128
  %v1193 = vpack.c.b16 %v1129, %v1129
  %v1194 = vpack.c.b16 %v1130, %v1130
  %v1195 = vpack.c.b16 %v1131, %v1131
  %v1196 = vpack.c.b16 %v1132, %v1132
  %v1197 = vpack.c.b16 %v1133, %v1133
  %v1198 = vpack.c.b16 %v1134, %v1134
  %v1199 = vpack.c.b16 %v1135, %v1135
  %v1200 = vpack.c.b16 %v1136, %v1136
  %v1201 = vpack.c.b16 %v1137, %v1137
  %v1202 = vpack.c.b16 %v1138, %v1138
  %v1203 = vpack.c.b16 %v1139, %v1139
  %v1204 = vpack.c.b16 %v1140, %v1140
  %v1205 = vpack.c.b16 %v1141, %v1141
  %v1206 = vpack.c.b16 %v1142, %v1142
  %v1207 = vpack.c.b16 %v1143, %v1143
  %v1208 = vpack.c.b16 %v1144, %v1144
  %v1209 = vpack.c.b16 %v1145, %v1145
  %v1210 = vpack.c.b16 %v1146, %v1146
  %v1211 = vpack.c.b16 %v1147, %v1147
  %v1212 = vpack.c.b16 %v1148, %v1148
  %v1213 = vpack.c.b16 %v1149, %v1149
  %v1214 = vpack.c.b16 %v1150, %v1150
  %v1215 = vpack.c.b16 %v1151, %v1151
  %v1216 = vpack.c.b16 %v1152, %v1152
  %1281 = vst [vmem:[%s4] sm:$0xf] %v1153
  %1282 = vst [vmem:[%s4 + $0x4] sm:$0xf] %v1154
  %1283 = vst [vmem:[%s4 + $0x8] sm:$0xf] %v1155
  %1284 = vst [vmem:[%s4 + $0xc] sm:$0xf] %v1156
  %1285 = vst [vmem:[%s4 + $0x10] sm:$0xf] %v1157
  %1286 = vst [vmem:[%s4 + $0x14] sm:$0xf] %v1158
  %1287 = vst [vmem:[%s4 + $0x18] sm:$0xf] %v1159
  %1288 = vst [vmem:[%s4 + $0x1c] sm:$0xf] %v1160
  %1289 = vst [vmem:[%s4 + $0x20] sm:$0xf] %v1161
  %1290 = vst [vmem:[%s4 + $0x24] sm:$0xf] %v1162
  %1291 = vst [vmem:[%s4 + $0x28] sm:$0xf] %v1163
  %1292 = vst [vmem:[%s4 + $0x2c] sm:$0xf] %v1164
  %1293 = vst [vmem:[%s4 + $0x30] sm:$0xf] %v1165
  %1294 = vst [vmem:[%s4 + $0x34] sm:$0xf] %v1166
  %1295 = vst [vmem:[%s4 + $0x38] sm:$0xf] %v1167
  %1296 = vst [vmem:[%s4 + $0x3c] sm:$0xf] %v1168
  %1297 = vst [vmem:[%s4 + $0x40] sm:$0xf] %v1169
  %1298 = vst [vmem:[%s4 + $0x44] sm:$0xf] %v1170
  %1299 = vst [vmem:[%s4 + $0x48] sm:$0xf] %v1171
  %1300 = vst [vmem:[%s4 + $0x4c] sm:$0xf] %v1172
  %1301 = vst [vmem:[%s4 + $0x50] sm:$0xf] %v1173
  %1302 = vst [vmem:[%s4 + $0x54] sm:$0xf] %v1174
  %1303 = vst [vmem:[%s4 + $0x58] sm:$0xf] %v1175
  %1304 = vst [vmem:[%s4 + $0x5c] sm:$0xf] %v1176
  %1305 = vst [vmem:[%s4 + $0x60] sm:$0xf] %v1177
  %1306 = vst [vmem:[%s4 + $0x64] sm:$0xf] %v1178
  %1307 = vst [vmem:[%s4 + $0x68] sm:$0xf] %v1179
  %1308 = vst [vmem:[%s4 + $0x6c] sm:$0xf] %v1180
  %1309 = vst [vmem:[%s4 + $0x70] sm:$0xf] %v1181
  %1310 = vst [vmem:[%s4 + $0x74] sm:$0xf] %v1182
  %1311 = vst [vmem:[%s4 + $0x78] sm:$0xf] %v1183
  %1312 = vst [vmem:[%s4 + $0x7c] sm:$0xf] %v1184
  %1313 = vst [vmem:[%s4 + $0x80] sm:$0xf] %v1185
  %1314 = vst [vmem:[%s4 + $0x84] sm:$0xf] %v1186
  %1315 = vst [vmem:[%s4 + $0x88] sm:$0xf] %v1187
  %1316 = vst [vmem:[%s4 + $0x8c] sm:$0xf] %v1188
  %1317 = vst [vmem:[%s4 + $0x90] sm:$0xf] %v1189
  %1318 = vst [vmem:[%s4 + $0x94] sm:$0xf] %v1190
  %1319 = vst [vmem:[%s4 + $0x98] sm:$0xf] %v1191
  %1320 = vst [vmem:[%s4 + $0x9c] sm:$0xf] %v1192
  %1321 = vst [vmem:[%s4 + $0xa0] sm:$0xf] %v1193
  %1322 = vst [vmem:[%s4 + $0xa4] sm:$0xf] %v1194
  %1323 = vst [vmem:[%s4 + $0xa8] sm:$0xf] %v1195
  %1324 = vst [vmem:[%s4 + $0xac] sm:$0xf] %v1196
  %1325 = vst [vmem:[%s4 + $0xb0] sm:$0xf] %v1197
  %1326 = vst [vmem:[%s4 + $0xb4] sm:$0xf] %v1198
  %1327 = vst [vmem:[%s4 + $0xb8] sm:$0xf] %v1199
  %1328 = vst [vmem:[%s4 + $0xbc] sm:$0xf] %v1200
  %1329 = vst [vmem:[%s4 + $0xc0] sm:$0xf] %v1201
  %1330 = vst [vmem:[%s4 + $0xc4] sm:$0xf] %v1202
  %1331 = vst [vmem:[%s4 + $0xc8] sm:$0xf] %v1203
  %1332 = vst [vmem:[%s4 + $0xcc] sm:$0xf] %v1204
  %1333 = vst [vmem:[%s4 + $0xd0] sm:$0xf] %v1205
  %1334 = vst [vmem:[%s4 + $0xd4] sm:$0xf] %v1206
  %1335 = vst [vmem:[%s4 + $0xd8] sm:$0xf] %v1207
  %1336 = vst [vmem:[%s4 + $0xdc] sm:$0xf] %v1208
  %1337 = vst [vmem:[%s4 + $0xe0] sm:$0xf] %v1209
  %1338 = vst [vmem:[%s4 + $0xe4] sm:$0xf] %v1210
  %1339 = vst [vmem:[%s4 + $0xe8] sm:$0xf] %v1211
  %1340 = vst [vmem:[%s4 + $0xec] sm:$0xf] %v1212
  %1341 = vst [vmem:[%s4 + $0xf0] sm:$0xf] %v1213
  %1342 = vst [vmem:[%s4 + $0xf4] sm:$0xf] %v1214
  %1343 = vst [vmem:[%s4 + $0xf8] sm:$0xf] %v1215
  %1344 = vst [vmem:[%s4 + $0xfc] sm:$0xf] %v1216
  // Predicated region
  $region18: #{matmul_scale_bias.1} parent=0 // pred_check
    _
  $region19: #{matmul_scale_bias.1} parent=0 // pred_check_branch
    %1346 = sbr.rel (0) target = $region21
  $region20: #{matmul_scale_bias.1} parent=0 // pred_region
    _
  $region21: #{matmul_scale_bias.1} parent=0 // pred_fallthru
    _
  // Predicated region
  $region22: #{matmul_scale_bias.1} parent=0 // pred_check
    _
  $region23: #{matmul_scale_bias.1} parent=0 // pred_check_branch
    %1348 = sbr.rel (0) target = $region25
  $region24: #{matmul_scale_bias.1} parent=0 // pred_region
    _
  $region25: #{matmul_scale_bias.1} parent=0 // pred_fallthru
    _

</llo_original>
